<compile_context>
chip_gen: v7x
topology: tpu7x:2x2x1
jax: 0.10.0
libtpu: 0.0.40
codegen_flags: <defaults>
</compile_context>

<pallas_src>
import functools

import jax
import jax.numpy as jnp
from jax import lax
from jax.experimental import pallas as pl
from jax.experimental.pallas import tpu as pltpu


def _round_up(a, b):
    return (a + b - 1) // b * b


def _sublane(itemsize):
    # 8 for 32-bit, 16 for bf16/f16, 32 for int8/fp8.
    return max(8, 32 // max(1, itemsize))


def _avg_kernel(x_ref, ones_ref, o_ref, *, inv_hw, rows_valid, tm, ragged):
    # x_ref: (tm, width) block; ones_ref: (width, k) (block-diagonal ones);
    # o_ref: (tm, k) per-channel means.
    x = x_ref[...]
    if ragged:
        # Tail rows of the last partial block are undefined; zero them so the
        # MXU sum of out-of-bounds rows stays finite (they are never written back).
        rid = pl.program_id(0) * tm + lax.broadcasted_iota(jnp.int32, (tm, 1), 0)
        x = jnp.where(rid < rows_valid, x, jnp.zeros((), x.dtype))
    # Row / per-channel sums on the MXU (idle otherwise), f32 accumulation.
    s = jnp.dot(x, ones_ref[...], preferred_element_type=jnp.float32)  # (tm, k)
    o_ref[...] = (s * inv_hw).astype(o_ref.dtype)


def _max_kernel(x_ref, o_ref, *, rows_valid, tm, ragged, fill):
    # x_ref: (tm, hw) block; o_ref: (tm, 1) per-row max.
    x = x_ref[...]
    if ragged:
        rid = pl.program_id(0) * tm + lax.broadcasted_iota(jnp.int32, (tm, 1), 0)
        x = jnp.where(rid < rows_valid, x, jnp.asarray(fill, dtype=x.dtype))
    o_ref[...] = jnp.max(x, axis=-1, keepdims=True).astype(o_ref.dtype)


def _pick_pack_factor(rows, hw, max_width=512):
    """Largest divisor k of `rows` with k*hw <= max_width (only when hw < 128)."""
    if hw >= 128 or rows <= 1:
        return 1
    kmax = max(1, max_width // hw)
    best = 1
    for k in range(1, min(kmax, rows) + 1):
        if rows % k == 0:
            best = k
    return best


def _choose_tile_rows(rows, width, itemsize, target_bytes=4 << 20):
    """Row-tile size: ~target_bytes per lane-padded input block, >=4 grid steps."""
    sub = _sublane(itemsize)
    # VMEM cost per row is the lane-padded width, not the logical width.
    row_bytes = _round_up(width, 128) * itemsize
    tm = max(sub, (target_bytes // max(1, row_bytes)) // sub * sub)
    # At least 4 grid steps when rows allow: 2 per TensorCore on v7x megacore,
    # and >=2 pipeline steps (DMA/compute overlap) on every generation.
    tm = min(tm, max(sub, _round_up(pl.cdiv(rows, 4), sub)))
    # Never larger than the (sublane-rounded) number of rows.
    tm = min(tm, _round_up(rows, sub))
    return tm


def global_pooling(x, pool_type):
    """Global spatial pooling matching PyTorch's global_pooling(x, pool_type)."""
    assert x.ndim == 4
    assert pool_type in ("avg", "max")
    N, C, H, W = x.shape
    rows = N * C
    hw = H * W
    dtype = x.dtype
    itemsize = jnp.dtype(dtype).itemsize

    # Channel packing (avg only): k channels per block row for small H*W.
    k = _pick_pack_factor(rows, hw) if pool_type == "avg" else 1
    width = k * hw
    rows_p = rows // k                       # packed row count (k divides rows)
    x2 = x.reshape(rows_p, width)            # free contiguous view of NCHW

    tm = _choose_tile_rows(rows_p, width, itemsize)
    num_tiles = pl.cdiv(rows_p, tm)
    ragged = (rows_p % tm) != 0              # mask tail rows in-kernel, no jnp.pad

    # Explicit VMEM budget from the lane-padded, double-buffered footprint.
    in_blk = tm * _round_up(width, 128) * itemsize
    out_blk = tm * _round_up(k, 128) * itemsize
    ones_blk = _round_up(width, 128) * _round_up(k, 128) * itemsize
    vmem_limit = int(min(max(2 * (in_blk + out_blk + ones_blk) + (2 << 20), 8 << 20),
                         48 << 20))

    cparams = pltpu.CompilerParams(
        dimension_semantics=("parallel",),
        vmem_limit_bytes=vmem_limit,
    )
    cost = pl.CostEstimate(
        flops=(2 if pool_type == "avg" else 1) * rows * hw,
        transcendentals=0,
        bytes_accessed=rows * hw * itemsize + rows * itemsize,
    )

    out_shape = jax.ShapeDtypeStruct((rows_p, k), dtype)
    out_spec = pl.BlockSpec((tm, k), lambda i: (i, 0))
    x_spec = pl.BlockSpec((tm, width), lambda i: (i, 0))

    if pool_type == "avg":
        # Block-diagonal ones: column j selects the lanes of packed channel j.
        seg = jnp.arange(width, dtype=jnp.int32) // hw
        ones_bd = (seg[:, None] == jnp.arange(k, dtype=jnp.int32)[None, :]).astype(dtype)
        kernel = functools.partial(
            _avg_kernel, inv_hw=1.0 / float(hw), rows_valid=rows_p, tm=tm, ragged=ragged)
        out = pl.pallas_call(
            kernel,
            out_shape=out_shape,
            grid=(num_tiles,),
            in_specs=[x_spec, pl.BlockSpec((width, k), lambda i: (0, 0))],
            out_specs=out_spec,
            compiler_params=cparams,
            cost_estimate=cost,
        )(x2, ones_bd)
    else:  # max
        if jnp.issubdtype(dtype, jnp.floating):
            fill = float("-inf")
        else:
            fill = int(jnp.iinfo(dtype).min)
        kernel = functools.partial(
            _max_kernel, rows_valid=rows_p, tm=tm, ragged=ragged, fill=fill)
        out = pl.pallas_call(
            kernel,
            out_shape=out_shape,
            grid=(num_tiles,),
            in_specs=[x_spec],
            out_specs=out_spec,
            compiler_params=cparams,
            cost_estimate=cost,
        )(x2)

    # (rows_p, k) is channel-ordered (packed row r, col j -> channel r*k + j).
    return out.reshape(N, C, 1, 1)


class GlobalPooling:
    """Stateless module mirroring the PyTorch GlobalPooling (no parameters)."""

    def __init__(self, pool_type):
        assert pool_type == "avg" or pool_type == "max"
        self.pool_type = pool_type

    def __call__(self, x):
        return global_pooling(x, pool_type=self.pool_type)


if __name__ == "__main__":
    key = jax.random.PRNGKey(0)

    ok = True
    # Main spec shape + one odd shape (non-aligned rows, small H*W) to exercise
    # the ragged-grid masking and channel-packing paths.
    for shape in ((2, 4, 16, 16), (3, 5, 7, 7)):
        N, C, H, W = shape
        key, sub = jax.random.split(key)
        x = jax.random.normal(sub, (N, C, H, W), dtype=jnp.float32)

        for pool_type in ("avg", "max"):
            mod = GlobalPooling(pool_type)
            y = jax.block_until_ready(mod(x))

            # Pure-JAX reference matching PyTorch semantics.
            if pool_type == "avg":
                ref = jnp.mean(x, axis=(2, 3), keepdims=True)
                # Looser tolerance: the avg sum runs on the MXU (pass-based f32).
                atol = rtol = 1e-3
            else:
                ref = jnp.max(x, axis=(2, 3), keepdims=True)
                atol = rtol = 1e-6

            if y.shape != (N, C, 1, 1):
                ok = False
            if not jnp.allclose(y, ref, atol=atol, rtol=rtol):
                ok = False

    if ok:
        print("KERNEL_OK")
    else:
        raise SystemExit("mismatch with reference")
</pallas_src>

<mosaic_0001>
module attributes {stable_mosaic.version = 11 : i64} {
  func.func @_avg_kernel(%arg0: i32, %arg1: memref<8x256xf32, #tpu.memory_space<vmem>>, %arg2: memref<256x1xf32, #tpu.memory_space<vmem>>, %arg3: memref<8x1xf32, #tpu.memory_space<vmem>>) attributes {dimension_semantics = [#tpu.dimension_semantics<parallel>], iteration_bounds = array<i64: 1>, scalar_prefetch = 0 : i64, scratch_operands = 0 : i64, tpu.core_type = #tpu.core_type<tc>, window_params = [{transform_indices = @transform_0, window_bounds = array<i64: 8, 256>}, {pipeline_mode = #tpu.pipeline_mode<synchronous>, transform_indices = @transform_1, window_bounds = array<i64: 256, 1>}, {transform_indices = @transform_2, window_bounds = array<i64: 8, 1>}]} {
    %c0 = arith.constant 0 : index
    %c0_0 = arith.constant 0 : index
    %0 = vector.load %arg1[%c0, %c0_0] : memref<8x256xf32, #tpu.memory_space<vmem>>, vector<8x256xf32>
    %c0_1 = arith.constant 0 : index
    %c0_2 = arith.constant 0 : index
    %1 = vector.load %arg2[%c0_1, %c0_2] : memref<256x1xf32, #tpu.memory_space<vmem>>, vector<256x1xf32>
    %cst = arith.constant dense<0.000000e+00> : vector<8x1xf32>
    %2 = tpu.matmul %0, %1, %cst {dimension_numbers = #tpu.dot_dimension_numbers<[1], [0], [0], [1], [0, 0, 1, 1], [], []>} : vector<8x256xf32>, vector<256x1xf32>, vector<8x1xf32> -> vector<8x1xf32>
    %cst_3 = arith.constant 3.906250e-03 : f32
    %3 = vector.broadcast %cst_3 : f32 to vector<8x1xf32>
    %4 = arith.mulf %2, %3 : vector<8x1xf32>
    %c0_4 = arith.constant 0 : index
    %c0_5 = arith.constant 0 : index
    %5 = vector.load %arg3[%c0_4, %c0_5] : memref<8x1xf32, #tpu.memory_space<vmem>>, vector<8x1xf32>
    tpu.vector_store %arg3[%c0_4, %c0_5], %4 {strides = array<i32>} : memref<8x1xf32, #tpu.memory_space<vmem>>, vector<8x1xf32>,
    return
  }
  func.func @transform_0(%arg0: i32) -> (i32, i32) {
    %c0_i32 = arith.constant 0 : i32
    %c0_i32_0 = arith.constant 0 : i32
    return %arg0, %c0_i32 : i32, i32
  }
  func.func @transform_1(%arg0: i32) -> (i32, i32) {
    %c0_i32 = arith.constant 0 : i32
    %c0_i32_0 = arith.constant 0 : i32
    %c0_i32_1 = arith.constant 0 : i32
    return %c0_i32, %c0_i32_0 : i32, i32
  }
  func.func @transform_2(%arg0: i32) -> (i32, i32) {
    %c0_i32 = arith.constant 0 : i32
    %c0_i32_0 = arith.constant 0 : i32
    return %arg0, %c0_i32 : i32, i32
  }
}

</mosaic_0001>

<llo_original>
// kernel: tpu_custom_call.1
$region0: #{tpu_custom_call.1}
  #allocation0 [shape = 'u32[]', space=smem, size = 0x4, offset = 0x4, fixed_abs, tag = 'smem constant byte address 0x4 - core index']
  #allocation1 [shape = 'u32[144,128]{1,0:T(1,128)}', space=vmem, size = 0x12000, scoped, tag = 'internal scratch']
  %s0 = inlined_call_operand.vmem [shape: f32[8,256], index: 0, kind: input, shape index: {}]
  %s1 = inlined_call_operand.vmem [shape: f32[256,1], index: 1, kind: input, shape index: {}]
  %s2 = inlined_call_operand.vmem [shape: f32[8,1], index: 2, kind: output, shape index: {}]
  %s3 = sld [smem:[#allocation0]]
  $region18: #{tpu_custom_call.1} parent=0
    _
  %s5 = ssub.s32 1, %s3
  %s6 = scalar_select 0, %s5, %s3
  // Predicated region
  $region2: #{tpu_custom_call.1} parent=0 // pred_check
    _
  $region3: #{tpu_custom_call.1} parent=0 // pred_check_branch
    %8 = sbr.rel (0) target = $region5
  $region4: #{tpu_custom_call.1} parent=0 // pred_region
    _
  $region5: #{tpu_custom_call.1} parent=0 // pred_fallthru
    _
  // Predicated region
  $region6: #{tpu_custom_call.1} parent=0 // pred_check
    _
  $region7: #{tpu_custom_call.1} parent=0 // pred_check_branch
    %10 = sbr.rel (0) target = $region9
  $region8: #{tpu_custom_call.1} parent=0 // pred_region
    _
  $region9: #{tpu_custom_call.1} parent=0 // pred_fallthru
    _
  %v11 = vld [vmem:[%s0] sm:$0xff]
  %v12 = vld [vmem:[%s0 + $0x8] sm:$0xff]
  %v13 = vld [vmem:[%s1] sm:$0xff]
  %v14 = vld [vmem:[%s1 + $0x8] sm:$0xff]
  %v15 = vld [vmem:[%s1 + $0x10] sm:$0xff]
  %v16 = vld [vmem:[%s1 + $0x18] sm:$0xff]
  %v17 = vld [vmem:[%s1 + $0x20] sm:$0xff]
  %v18 = vld [vmem:[%s1 + $0x28] sm:$0xff]
  %v19 = vld [vmem:[%s1 + $0x30] sm:$0xff]
  %v20 = vld [vmem:[%s1 + $0x38] sm:$0xff]
  %v21 = vld [vmem:[%s1 + $0x40] sm:$0xff]
  %v22 = vld [vmem:[%s1 + $0x48] sm:$0xff]
  %v23 = vld [vmem:[%s1 + $0x50] sm:$0xff]
  %v24 = vld [vmem:[%s1 + $0x58] sm:$0xff]
  %v25 = vld [vmem:[%s1 + $0x60] sm:$0xff]
  %v26 = vld [vmem:[%s1 + $0x68] sm:$0xff]
  %v27 = vld [vmem:[%s1 + $0x70] sm:$0xff]
  %v28 = vld [vmem:[%s1 + $0x78] sm:$0xff]
  %v29 = vld [vmem:[%s1 + $0x80] sm:$0xff]
  %v30 = vld [vmem:[%s1 + $0x88] sm:$0xff]
  %v31 = vld [vmem:[%s1 + $0x90] sm:$0xff]
  %v32 = vld [vmem:[%s1 + $0x98] sm:$0xff]
  %v33 = vld [vmem:[%s1 + $0xa0] sm:$0xff]
  %v34 = vld [vmem:[%s1 + $0xa8] sm:$0xff]
  %v35 = vld [vmem:[%s1 + $0xb0] sm:$0xff]
  %v36 = vld [vmem:[%s1 + $0xb8] sm:$0xff]
  %v37 = vld [vmem:[%s1 + $0xc0] sm:$0xff]
  %v38 = vld [vmem:[%s1 + $0xc8] sm:$0xff]
  %v39 = vld [vmem:[%s1 + $0xd0] sm:$0xff]
  %v40 = vld [vmem:[%s1 + $0xd8] sm:$0xff]
  %v41 = vld [vmem:[%s1 + $0xe0] sm:$0xff]
  %v42 = vld [vmem:[%s1 + $0xe8] sm:$0xff]
  %v43 = vld [vmem:[%s1 + $0xf0] sm:$0xff]
  %v44 = vld [vmem:[%s1 + $0xf8] sm:$0xff]
  %45 = vmatprep.subr.mxu0 0.0
  %46 = vmatpush1.msra.mxu0 %v13
  %47 = vmatprep.subr.mxu0 0.0
  %48 = vmatpush1.msra.mxu0 %v14
  %49 = vmatprep.subr.mxu0 0.0
  %50 = vmatpush1.msra.mxu0 %v15
  %51 = vmatprep.subr.mxu0 0.0
  %52 = vmatpush1.msra.mxu0 %v16
  %53 = vmatprep.subr.mxu0 0.0
  %54 = vmatpush1.msra.mxu0 %v17
  %55 = vmatprep.subr.mxu0 0.0
  %56 = vmatpush1.msra.mxu0 %v18
  %57 = vmatprep.subr.mxu0 0.0
  %58 = vmatpush1.msra.mxu0 %v19
  %59 = vmatprep.subr.mxu0 0.0
  %60 = vmatpush1.msra.mxu0 %v20
  %61 = vmatprep.subr.mxu0 0.0
  %62 = vmatpush1.msra.mxu0 %v21
  %63 = vmatprep.subr.mxu0 0.0
  %64 = vmatpush1.msra.mxu0 %v22
  %65 = vmatprep.subr.mxu0 0.0
  %66 = vmatpush1.msra.mxu0 %v23
  %67 = vmatprep.subr.mxu0 0.0
  %68 = vmatpush1.msra.mxu0 %v24
  %69 = vmatprep.subr.mxu0 0.0
  %70 = vmatpush1.msra.mxu0 %v25
  %71 = vmatprep.subr.mxu0 0.0
  %72 = vmatpush1.msra.mxu0 %v26
  %73 = vmatprep.subr.mxu0 0.0
  %74 = vmatpush1.msra.mxu0 %v27
  %75 = vmatprep.subr.mxu0 0.0
  %76 = vmatpush1.msra.mxu0 %v28
  %77 = vmatprep.subr.mxu0 0.0
  %78 = vmatpush1.msra.mxu0 %v29
  %79 = vmatprep.subr.mxu0 0.0
  %80 = vmatpush1.msra.mxu0 %v30
  %81 = vmatprep.subr.mxu0 0.0
  %82 = vmatpush1.msra.mxu0 %v31
  %83 = vmatprep.subr.mxu0 0.0
  %84 = vmatpush1.msra.mxu0 %v32
  %85 = vmatprep.subr.mxu0 0.0
  %86 = vmatpush1.msra.mxu0 %v33
  %87 = vmatprep.subr.mxu0 0.0
  %88 = vmatpush1.msra.mxu0 %v34
  %89 = vmatprep.subr.mxu0 0.0
  %90 = vmatpush1.msra.mxu0 %v35
  %91 = vmatprep.subr.mxu0 0.0
  %92 = vmatpush1.msra.mxu0 %v36
  %93 = vmatprep.subr.mxu0 0.0
  %94 = vmatpush1.msra.mxu0 %v37
  %95 = vmatprep.subr.mxu0 0.0
  %96 = vmatpush1.msra.mxu0 %v38
  %97 = vmatprep.subr.mxu0 0.0
  %98 = vmatpush1.msra.mxu0 %v39
  %99 = vmatprep.subr.mxu0 0.0
  %100 = vmatpush1.msra.mxu0 %v40
  %101 = vmatprep.subr.mxu0 0.0
  %102 = vmatpush1.msra.mxu0 %v41
  %103 = vmatprep.subr.mxu0 0.0
  %104 = vmatpush1.msra.mxu0 %v42
  %105 = vmatprep.subr.mxu0 0.0
  %106 = vmatpush1.msra.mxu0 %v43
  %107 = vmatprep.subr.mxu0 0.0
  %108 = vmatpush1.msra.mxu0 %v44
  %109 = vmatprep.mubr.f32.mxu0 %v12
  %110 = vmatmul.mubr.f32.gmra.mrb[0].mxu0 %v11
  %v111 = vpop.f32.mrb[0].mxu0
  %v112 = vadd.f32 0.0, %v111
  %v113 = vpop.f32.mrb[0].mxu0
  %114 = vdwg.mxu0
  %v115 = vmul.f32 %v112, 0.00390625
  %vm116 = vcmask 7168
  %117 = vst.msk [vmem:[%s2] sm:$0xff] %vm116, %v115
  // Predicated region
  $region10: #{tpu_custom_call.1} parent=0 // pred_check
    _
  $region11: #{tpu_custom_call.1} parent=0 // pred_check_branch
    %119 = sbr.rel (0) target = $region13
  $region12: #{tpu_custom_call.1} parent=0 // pred_region
    _
  $region13: #{tpu_custom_call.1} parent=0 // pred_fallthru
    _
  // Predicated region
  $region14: #{tpu_custom_call.1} parent=0 // pred_check
    _
  $region15: #{tpu_custom_call.1} parent=0 // pred_check_branch
    %121 = sbr.rel (0) target = $region17
  $region16: #{tpu_custom_call.1} parent=0 // pred_region
    _
  $region17: #{tpu_custom_call.1} parent=0 // pred_fallthru
    _

</llo_original>
